<compile_context>
chip_gen: v7x
topology: tpu7x:2x2x1
jax: 0.10.0
libtpu: 0.0.40
codegen_flags: <defaults>
</compile_context>

<pallas_src>
import jax
import jax.numpy as jnp
from jax.experimental import pallas as pl
from jax.experimental.pallas import tpu as pltpu


def _round_up(x, m):
    return (x + m - 1) // m * m


def _block_vmem_bytes(rows, cols, itemsize):
    """VMEM bytes of one (rows, cols) block incl. (sublane, 128-lane) padding."""
    sublane = {4: 8, 2: 16, 1: 32}[itemsize]
    return _round_up(max(rows, 1), sublane) * _round_up(max(cols, 1), 128) * itemsize


def _need_bytes(tm, k, tn):
    """Double-buffered, layout-padded VMEM footprint of one grid step."""
    return (2 * _block_vmem_bytes(tm, k, 2)      # patches block  (bf16)
            + 2 * _block_vmem_bytes(k, tn, 2)    # weight block   (bf16)
            + 2 * _block_vmem_bytes(tm, tn, 2)   # output block   (bf16)
            + 4 * _block_vmem_bytes(1, tn, 4))   # BN scale+bias  (f32)


def _pick_tiles(m_total, k, cout_p, budget):
    """Largest MXU/layout-friendly (tm, tn) whose padded footprint fits budget."""
    tn_opts = [t for t in (512, 256, 128) if cout_p % t == 0] or [cout_p]
    m_cap = max(_round_up(m_total, 8), 8)
    tm_opts = [t for t in (2048, 1024, 512, 256, 128, 64, 32, 16, 8)
               if t <= m_cap] or [8]
    for tn in tn_opts:                       # prefer wide N (v6e/v7x 256-wide MXU)
        for tm in tm_opts:                   # then the largest row tile that fits
            if _need_bytes(tm, k, tn) <= budget:
                return tm, tn
    return tm_opts[-1], tn_opts[-1]


def _vmem_capacity_bytes():
    try:
        return int(pltpu.get_tpu_info().vmem_capacity_bytes)
    except Exception:
        return 64 * 2**20                    # v7x-safe fallback


# ---------------------------------------------------------------------------
# Pallas kernel: one (tm, K) @ (K, tn) MXU matmul + folded BN + ReLU per step.
# K = kh*kw*cin is the whole conv reduction -> no K grid axis, no accumulator
# scratch, no per-tap VMEM round trips.
# ---------------------------------------------------------------------------
def _matmul_bn_relu_kernel(a_ref, w_ref, s_ref, b_ref, o_ref):
    acc = jnp.dot(a_ref[...], w_ref[...], preferred_element_type=jnp.float32)
    y = acc * s_ref[...] + b_ref[...]                  # folded eval-mode BN (f32)
    o_ref[...] = jnp.maximum(y, 0.0).astype(o_ref.dtype)   # ReLU, bf16 store


# ---------------------------------------------------------------------------
# wrapper: ConvBNReLU.forward (eval-mode BN folded into scale/bias)
# ---------------------------------------------------------------------------
def conv_bn_relu(x_nchw, params):
    w = params["weight"]                               # (Cout, Cin, kh, kw) f32
    stride = params["stride"]
    padding = params["padding"]
    dilation = params["dilation"]
    cout, cin, kh, kw = w.shape
    n, c, h, wd = x_nchw.shape
    assert c == cin

    h_out = (h + 2 * padding - dilation * (kh - 1) - 1) // stride + 1
    w_out = (wd + 2 * padding - dilation * (kw - 1) - 1) // stride + 1
    K = kh * kw * cin                                  # folded contraction dim
    M = n * h_out * w_out                              # output "rows"

    # ---- fold BN (eval mode, running stats) into scale / bias --------------
    scale = params["bn_gamma"] * jax.lax.rsqrt(params["bn_var"] + params["bn_eps"])
    bias = (params["conv_bias"] - params["bn_mean"]) * scale + params["bn_beta"]

    cout_p = _round_up(cout, 128)                      # lane-dense output stores

    # ---- generation-aware tile selection & VMEM limit -----------------------
    cap = _vmem_capacity_bytes()
    budget = int(cap * 0.6)                            # headroom for Mosaic scratch
    tm, tn = _pick_tiles(M, K, cout_p, budget)
    num_n = cout_p // tn
    num_m = -(-M // tm)
    # keep >=2 parallel grid blocks when there is enough work (v7x megacore)
    while num_m * num_n < 2 and tm > 8 and M > 8:
        tm = max(tm // 2, 8)
        num_m = -(-M // tm)
    m_pad = num_m * tm
    need = _need_bytes(tm, K, tn)
    vmem_limit = int(min(max(2 * need, 32 * 2**20), cap - 8 * 2**20))

    # ---- one-time parameter prep: (K, cout_p) bf16 weights, f32 scale/bias --
    w_mat = jnp.transpose(w, (2, 3, 1, 0)).reshape(K, cout)   # k=(ky,kx,ci)
    w_mat = jnp.pad(w_mat, ((0, 0), (0, cout_p - cout))).astype(jnp.bfloat16)
    scale_p = jnp.pad(scale, (0, cout_p - cout)).reshape(1, cout_p).astype(jnp.float32)
    bias_p = jnp.pad(bias, (0, cout_p - cout)).reshape(1, cout_p).astype(jnp.float32)

    # ---- activations: NCHW -> NHWC bf16, conv zero-pad, tap-major K fold ----
    xh = jnp.transpose(x_nchw, (0, 2, 3, 1)).astype(jnp.bfloat16)
    xp = jnp.pad(xh, ((0, 0), (padding, padding), (padding, padding), (0, 0)))
    taps = []
    for ky in range(kh):
        for kx in range(kw):
            y0, x0 = ky * dilation, kx * dilation
            taps.append(xp[:, y0:y0 + (h_out - 1) * stride + 1:stride,
                              x0:x0 + (w_out - 1) * stride + 1:stride, :])
    a = jnp.concatenate(taps, axis=-1).reshape(M, K)   # (M, kh*kw*cin), bf16
    if m_pad > M:
        a = jnp.pad(a, ((0, m_pad - M), (0, 0)))       # garbage rows, dropped later

    out = pl.pallas_call(
        _matmul_bn_relu_kernel,
        out_shape=jax.ShapeDtypeStruct((m_pad, cout_p), jnp.bfloat16),
        grid_spec=pltpu.PrefetchScalarGridSpec(
            num_scalar_prefetch=0,
            grid=(num_m, num_n),
            in_specs=[
                pl.BlockSpec((tm, K), lambda i, j: (i, 0)),
                pl.BlockSpec((K, tn), lambda i, j: (0, j)),
                pl.BlockSpec((1, tn), lambda i, j: (0, j)),
                pl.BlockSpec((1, tn), lambda i, j: (0, j)),
            ],
            out_specs=pl.BlockSpec((tm, tn), lambda i, j: (i, j)),
        ),
        compiler_params=pltpu.CompilerParams(
            dimension_semantics=("parallel", "parallel"),
            vmem_limit_bytes=vmem_limit),
    )(a, w_mat, scale_p, bias_p)

    # drop padded rows / channels, back to NCHW f32 (one fused transpose copy).
    # (When chaining layers, keeping NHWC bf16 here would skip this round trip.)
    out = out[:M, :cout].reshape(n, h_out, w_out, cout)
    return jnp.transpose(out, (0, 3, 1, 2)).astype(jnp.float32)


# ---------------------------------------------------------------------------
# plain-JAX reference (f32) for a correctness self-check
# ---------------------------------------------------------------------------
def _reference(x, p):
    y = jax.lax.conv_general_dilated(
        x, p["weight"],
        window_strides=(p["stride"], p["stride"]),
        padding=[(p["padding"], p["padding"])] * 2,
        rhs_dilation=(p["dilation"], p["dilation"]),
        dimension_numbers=("NCHW", "OIHW", "NCHW"))
    y = y + p["conv_bias"][None, :, None, None]
    scale = p["bn_gamma"] / jnp.sqrt(p["bn_var"] + p["bn_eps"])
    y = (y - p["bn_mean"][None, :, None, None]) * scale[None, :, None, None] \
        + p["bn_beta"][None, :, None, None]
    return jnp.maximum(y, 0.0)


# ---------------------------------------------------------------------------
if __name__ == "__main__":
    key = jax.random.PRNGKey(0)
    k1, k2, k3, k4, k5, k6 = jax.random.split(key, 6)

    in_chan, out_chan, ks = 4, 32, 3
    x = jax.random.normal(k1, (2, in_chan, 16, 16), jnp.float32)       # NCHW

    fan_in = in_chan * ks * ks
    base = dict(
        # kaiming_normal_(a=1)-style init; conv bias zero-initialized as in module
        weight=jax.random.normal(k2, (out_chan, in_chan, ks, ks), jnp.float32)
               * (1.0 / fan_in) ** 0.5,
        conv_bias=jnp.zeros((out_chan,), jnp.float32),
        # TODO(synk): BatchNorm2d folded in eval mode (running stats); training-
        # mode batch statistics are not computed in-kernel.
        bn_gamma=jax.random.uniform(k3, (out_chan,), minval=0.5, maxval=1.5),
        bn_beta=jax.random.normal(k4, (out_chan,)) * 0.1,
        bn_mean=jax.random.normal(k5, (out_chan,)) * 0.1,
        bn_var=jax.random.uniform(k6, (out_chan,), minval=0.5, maxval=1.5),
        bn_eps=1e-5,
    )

    # module default config + the previously-untested stride>1 / dilation>1 paths
    for stride, padding, dilation in ((1, 1, 1), (2, 1, 1), (1, 2, 2)):
        p = dict(base, stride=stride, padding=padding, dilation=dilation)
        fwd = jax.jit(lambda t, p=p: conv_bn_relu(t, p))
        out = jax.block_until_ready(fwd(x))
        ref = _reference(x, p)
        assert out.shape == ref.shape, (out.shape, ref.shape)
        assert bool(jnp.all(jnp.isfinite(out)))
        err = float(jnp.max(jnp.abs(out - ref)))
        assert bool(jnp.allclose(out, ref, rtol=5e-2, atol=5e-2)), (
            stride, padding, dilation, err)

    print("KERNEL_OK")
</pallas_src>

<mosaic_0001>
module attributes {stable_mosaic.version = 11 : i64} {
  func.func @_matmul_bn_relu_kernel(%arg0: i32, %arg1: i32, %arg2: memref<256x36xbf16, #tpu.memory_space<vmem>>, %arg3: memref<36x128xbf16, #tpu.memory_space<vmem>>, %arg4: memref<1x128xf32, #tpu.memory_space<vmem>>, %arg5: memref<1x128xf32, #tpu.memory_space<vmem>>, %arg6: memref<256x128xbf16, #tpu.memory_space<vmem>>) attributes {dimension_semantics = [#tpu.dimension_semantics<parallel>, #tpu.dimension_semantics<parallel>], iteration_bounds = array<i64: 2, 1>, scalar_prefetch = 0 : i64, scratch_operands = 0 : i64, tpu.core_type = #tpu.core_type<tc>, window_params = [{transform_indices = @transform_0, window_bounds = array<i64: 256, 36>}, {transform_indices = @transform_1, window_bounds = array<i64: 36, 128>}, {transform_indices = @transform_2, window_bounds = array<i64: 1, 128>}, {transform_indices = @transform_3, window_bounds = array<i64: 1, 128>}, {transform_indices = @transform_4, window_bounds = array<i64: 256, 128>}]} {
    %c0 = arith.constant 0 : index
    %c0_0 = arith.constant 0 : index
    %0 = vector.load %arg2[%c0, %c0_0] : memref<256x36xbf16, #tpu.memory_space<vmem>>, vector<256x36xbf16>
    %c0_1 = arith.constant 0 : index
    %c0_2 = arith.constant 0 : index
    %1 = vector.load %arg3[%c0_1, %c0_2] : memref<36x128xbf16, #tpu.memory_space<vmem>>, vector<36x128xbf16>
    %cst = arith.constant dense<0.000000e+00> : vector<256x128xf32>
    %2 = tpu.matmul %0, %1, %cst {dimension_numbers = #tpu.dot_dimension_numbers<[1], [0], [0], [1], [0, 0, 1, 1], [], []>} : vector<256x36xbf16>, vector<36x128xbf16>, vector<256x128xf32> -> vector<256x128xf32>
    %c0_3 = arith.constant 0 : index
    %c0_4 = arith.constant 0 : index
    %3 = vector.load %arg4[%c0_3, %c0_4] : memref<1x128xf32, #tpu.memory_space<vmem>>, vector<1x128xf32>
    %4 = vector.broadcast %3 : vector<1x128xf32> to vector<256x128xf32>
    %5 = arith.mulf %2, %4 : vector<256x128xf32>
    %c0_5 = arith.constant 0 : index
    %c0_6 = arith.constant 0 : index
    %6 = vector.load %arg5[%c0_5, %c0_6] : memref<1x128xf32, #tpu.memory_space<vmem>>, vector<1x128xf32>
    %7 = vector.broadcast %6 : vector<1x128xf32> to vector<256x128xf32>
    %8 = arith.addf %5, %7 : vector<256x128xf32>
    %cst_7 = arith.constant 0.000000e+00 : f32
    %9 = vector.broadcast %cst_7 : f32 to vector<256x128xf32>
    %10 = arith.maximumf %8, %9 : vector<256x128xf32>
    %11 = arith.truncf %10 : vector<256x128xf32> to vector<256x128xbf16>
    %c0_8 = arith.constant 0 : index
    %c0_9 = arith.constant 0 : index
    %12 = vector.load %arg6[%c0_8, %c0_9] : memref<256x128xbf16, #tpu.memory_space<vmem>>, vector<256x128xbf16>
    tpu.vector_store %arg6[%c0_8, %c0_9], %11 {strides = array<i32>} : memref<256x128xbf16, #tpu.memory_space<vmem>>, vector<256x128xbf16>,
    return
  }
  func.func @transform_0(%arg0: i32, %arg1: i32) -> (i32, i32) {
    %c0_i32 = arith.constant 0 : i32
    %c0_i32_0 = arith.constant 0 : i32
    return %arg0, %c0_i32 : i32, i32
  }
  func.func @transform_1(%arg0: i32, %arg1: i32) -> (i32, i32) {
    %c0_i32 = arith.constant 0 : i32
    %c0_i32_0 = arith.constant 0 : i32
    return %c0_i32, %arg1 : i32, i32
  }
  func.func @transform_2(%arg0: i32, %arg1: i32) -> (i32, i32) {
    %c0_i32 = arith.constant 0 : i32
    %c0_i32_0 = arith.constant 0 : i32
    return %c0_i32, %arg1 : i32, i32
  }
  func.func @transform_3(%arg0: i32, %arg1: i32) -> (i32, i32) {
    %c0_i32 = arith.constant 0 : i32
    %c0_i32_0 = arith.constant 0 : i32
    return %c0_i32, %arg1 : i32, i32
  }
  func.func @transform_4(%arg0: i32, %arg1: i32) -> (i32, i32) {
    %c0_i32 = arith.constant 0 : i32
    return %arg0, %arg1 : i32, i32
  }
}

</mosaic_0001>

<llo_original>
// kernel: _lambda_.1
$region0: #{_lambda_.1}
  #allocation0 [shape = 'u32[]', space=smem, size = 0x4, offset = 0x4, fixed_abs, tag = 'smem constant byte address 0x4 - core index']
  #allocation1 [shape = 'u32[144,128]{1,0:T(1,128)}', space=vmem, size = 0x12000, scoped, tag = 'internal scratch']
  %s0 = inlined_call_operand.vmem [shape: bf16[512,36], index: 0, kind: input, shape index: {}]
  %s1 = inlined_call_operand.vmem [shape: bf16[36,128], index: 1, kind: input, shape index: {}]
  %s2 = inlined_call_operand.vmem [shape: f32[1,128], index: 2, kind: input, shape index: {}]
  %s3 = inlined_call_operand.vmem [shape: f32[1,128], index: 3, kind: input, shape index: {}]
  %s4 = inlined_call_operand.vmem [shape: bf16[512,128], index: 4, kind: output, shape index: {}]
  %s5 = sld [smem:[#allocation0]]
  $region49: #{_lambda_.1} parent=0
    _
  %s7 = ssub.s32 1, %s5
  %s8 = scalar_select 0, %s7, %s5
  loop: start=0, step=1, limit=4
  $region2: #{_lambda_.1} parent=0 // loop_pre_header
    _
  $region3: #{_lambda_.1} parent=0 // loop_header
    %s10 = sphi 0, %s14
    %p11 = scmp.ge.s32.totalorder %s10, 4
    %s17 = sphi 0, %s29
    %s18 = sphi 0, %s25
    %s19 = sphi 0, %s17
    %s20 = sphi 0, %s18
    %s21 = sphi 0, %s19
    %s22 = sphi 0, %s20
    %s32 = sphi 0, %s34
    %s35 = sphi 0, %s32
    %s36 = sphi 0, %s35
    %s52 = sphi 0, %s36
    %s58 = sphi 0, %s60
    %s61 = sphi 0, %s58
    %s62 = sphi 0, %s61
    %s78 = sphi 0, %s62
    %s84 = sphi 0, %s86
    %s87 = sphi 0, %s84
    %s88 = sphi 0, %s87
    %s104 = sphi 0, %s88
    %s110 = sphi 0, %s112
    %s113 = sphi 0, %s110
    %s114 = sphi 0, %s113
    %s130 = sphi 0, %s114
    %s138 = sphi 0, %s140
    %s141 = sphi 0, %s138
    %s142 = sphi 0, %s141
    %s158 = sphi 0, %s142
  $region4: #{_lambda_.1} parent=0 // loop_header_branch
    %13 = sbr.rel (%p11) target = $region8
  $region5: #{_lambda_.1} parent=0 // loop_body
    %s15 = ssub.s32 %s10, 1
    %s16 = ssub.s32 %s10, 2
    %s23 = sadd.s32 1, %s18
    %p24 = scmp.ge.s32.totalorder %s23, 1
    %s25 = scalar_select %p24, 0, %s23
    %s26 = sadd.s32 1, %s17
    %s27 = scalar_select %p24, %s26, %s17
    %p28 = scmp.ge.s32.totalorder %s27, 2
    %s29 = scalar_select %p28, 0, %s27
    %s30 = ssub.s32 %s17, %s29
    %p31 = scmp.eq.s32.totalorder %s30, 0
    %s33 = sadd.s32 %s32, 1
    %s34 = scalar_select %p31, %s32, %s33
    %p37 = pneg %p31
    %p38 = scmp.eq.s32.totalorder %s10, 1
    %p39 = por %p37, %p38
    %p40 = scmp.ne.s32.totalorder %s32, %s35
    %p41 = scmp.eq.s32.totalorder %s10, 0
    %p42 = por %p40, %p41
    %p43 = scmp.ne.s32.totalorder %s32, %s35
    %p44 = scmp.eq.s32.totalorder %s15, 1
    %p45 = por %p43, %p44
    %p46 = scmp.ne.s32.totalorder %s35, %s36
    %p47 = scmp.eq.s32.totalorder %s15, 0
    %p48 = por %p46, %p47
    %p49 = scmp.ne.s32.totalorder %s35, %s36
    %p50 = scmp.eq.s32.totalorder %s16, 1
    %p51 = por %p49, %p50
    %p53 = scmp.ne.s32.totalorder %s36, %s52
    %p54 = scmp.eq.s32.totalorder %s16, 0
    %p55 = por %p53, %p54
    %s56 = ssub.s32 %s18, %s25
    %p57 = scmp.eq.s32.totalorder %s56, 0
    %s59 = sadd.s32 %s58, 1
    %s60 = scalar_select %p57, %s58, %s59
    %p63 = pneg %p57
    %p64 = scmp.eq.s32.totalorder %s10, 1
    %p65 = por %p63, %p64
    %p66 = scmp.ne.s32.totalorder %s58, %s61
    %p67 = scmp.eq.s32.totalorder %s10, 0
    %p68 = por %p66, %p67
    %p69 = scmp.ne.s32.totalorder %s58, %s61
    %p70 = scmp.eq.s32.totalorder %s15, 1
    %p71 = por %p69, %p70
    %p72 = scmp.ne.s32.totalorder %s61, %s62
    %p73 = scmp.eq.s32.totalorder %s15, 0
    %p74 = por %p72, %p73
    %p75 = scmp.ne.s32.totalorder %s61, %s62
    %p76 = scmp.eq.s32.totalorder %s16, 1
    %p77 = por %p75, %p76
    %p79 = scmp.ne.s32.totalorder %s62, %s78
    %p80 = scmp.eq.s32.totalorder %s16, 0
    %p81 = por %p79, %p80
    %s82 = ssub.s32 %s18, %s25
    %p83 = scmp.eq.s32.totalorder %s82, 0
    %s85 = sadd.s32 %s84, 1
    %s86 = scalar_select %p83, %s84, %s85
    %p89 = pneg %p83
    %p90 = scmp.eq.s32.totalorder %s10, 1
    %p91 = por %p89, %p90
    %p92 = scmp.ne.s32.totalorder %s84, %s87
    %p93 = scmp.eq.s32.totalorder %s10, 0
    %p94 = por %p92, %p93
    %p95 = scmp.ne.s32.totalorder %s84, %s87
    %p96 = scmp.eq.s32.totalorder %s15, 1
    %p97 = por %p95, %p96
    %p98 = scmp.ne.s32.totalorder %s87, %s88
    %p99 = scmp.eq.s32.totalorder %s15, 0
    %p100 = por %p98, %p99
    %p101 = scmp.ne.s32.totalorder %s87, %s88
    %p102 = scmp.eq.s32.totalorder %s16, 1
    %p103 = por %p101, %p102
    %p105 = scmp.ne.s32.totalorder %s88, %s104
    %p106 = scmp.eq.s32.totalorder %s16, 0
    %p107 = por %p105, %p106
    %s108 = ssub.s32 %s18, %s25
    %p109 = scmp.eq.s32.totalorder %s108, 0
    %s111 = sadd.s32 %s110, 1
    %s112 = scalar_select %p109, %s110, %s111
    %p115 = pneg %p109
    %p116 = scmp.eq.s32.totalorder %s10, 1
    %p117 = por %p115, %p116
    %p118 = scmp.ne.s32.totalorder %s110, %s113
    %p119 = scmp.eq.s32.totalorder %s10, 0
    %p120 = por %p118, %p119
    %p121 = scmp.ne.s32.totalorder %s110, %s113
    %p122 = scmp.eq.s32.totalorder %s15, 1
    %p123 = por %p121, %p122
    %p124 = scmp.ne.s32.totalorder %s113, %s114
    %p125 = scmp.eq.s32.totalorder %s15, 0
    %p126 = por %p124, %p125
    %p127 = scmp.ne.s32.totalorder %s113, %s114
    %p128 = scmp.eq.s32.totalorder %s16, 1
    %p129 = por %p127, %p128
    %p131 = scmp.ne.s32.totalorder %s114, %s130
    %p132 = scmp.eq.s32.totalorder %s16, 0
    %p133 = por %p131, %p132
    %s134 = ssub.s32 %s17, %s29
    %s135 = ssub.s32 %s18, %s25
    %s136 = sor.u32 %s134, %s135
    %p137 = scmp.eq.s32.totalorder %s136, 0
    %s139 = sadd.s32 %s138, 1
    %s140 = scalar_select %p137, %s138, %s139
    %p143 = pneg %p137
    %p144 = scmp.eq.s32.totalorder %s10, 1
    %p145 = por %p143, %p144
    %p146 = scmp.ne.s32.totalorder %s138, %s141
    %p147 = scmp.eq.s32.totalorder %s10, 0
    %p148 = por %p146, %p147
    %p149 = scmp.ne.s32.totalorder %s138, %s141
    %p150 = scmp.eq.s32.totalorder %s15, 1
    %p151 = por %p149, %p150
    %p152 = scmp.ne.s32.totalorder %s141, %s142
    %p153 = scmp.eq.s32.totalorder %s15, 0
    %p154 = por %p152, %p153
    %p155 = scmp.ne.s32.totalorder %s141, %s142
    %p156 = scmp.eq.s32.totalorder %s16, 1
    %p157 = por %p155, %p156
    %p159 = scmp.ne.s32.totalorder %s142, %s158
    %p160 = scmp.eq.s32.totalorder %s16, 0
    %p161 = por %p159, %p160
    %p162 = scmp.le.s32.totalorder 1, %s10
    %p163 = scmp.lt.s32.totalorder %s10, 3
    %p164 = pnand %p162, %p163
    %p165 = pneg %p164
    // Predicated region
    $region9: #{_lambda_.1} parent=5 // pred_check
      _
    $region10: #{_lambda_.1} parent=5 // pred_check_branch
      %167 = sbr.rel (%p164) target = $region12
    $region11: #{_lambda_.1} parent=5 // pred_region
      %s168 = ssub.s32 %s10, 1
      // Predicated region
      $region13: #{_lambda_.1} parent=11 // pred_check
        %p169 = pneg %p74
      $region14: #{_lambda_.1} parent=11 // pred_check_branch
        %171 = sbr.rel (%p169) target = $region16
      $region15: #{_lambda_.1} parent=11 // pred_region
        %p172 = scmp.lt.s32.totalorder %s20, 0
        %s173 = scalar_select %p172, %s20, 0
        %s174 = smul.addr %s173, 4
        %s175 = scalar_lea.vmem %s1, %s174
      $region16: #{_lambda_.1} parent=11 // pred_fallthru
        _
      // Predicated region
      $region17: #{_lambda_.1} parent=11 // pred_check
        %p176 = pneg %p100
      $region18: #{_lambda_.1} parent=11 // pred_check_branch
        %178 = sbr.rel (%p176) target = $region20
      $region19: #{_lambda_.1} parent=11 // pred_region
        %p179 = scmp.lt.s32.totalorder %s20, 0
        %s180 = scalar_select %p179, %s20, 0
        %s181 = scalar_lea.vmem %s2, %s180
      $region20: #{_lambda_.1} parent=11 // pred_fallthru
        _
      // Predicated region
      $region21: #{_lambda_.1} parent=11 // pred_check
        %p182 = pneg %p126
      $region22: #{_lambda_.1} parent=11 // pred_check_branch
        %184 = sbr.rel (%p182) target = $region24
      $region23: #{_lambda_.1} parent=11 // pred_region
        %p185 = scmp.lt.s32.totalorder %s20, 0
        %s186 = scalar_select %p185, %s20, 0
        %s187 = scalar_lea.vmem %s3, %s186
      $region24: #{_lambda_.1} parent=11 // pred_fallthru
        _
    $region12: #{_lambda_.1} parent=5 // pred_fallthru
      _
    %p188 = scmp.lt.s32.totalorder %s10, 2
    // Predicated region
    $region25: #{_lambda_.1} parent=5 // pred_check
      %p189 = pneg %p188
    $region26: #{_lambda_.1} parent=5 // pred_check_branch
      %191 = sbr.rel (%p189) target = $region28
    $region27: #{_lambda_.1} parent=5 // pred_region
      // Predicated region
      $region29: #{_lambda_.1} parent=27 // pred_check
        %p192 = pneg %p42
      $region30: #{_lambda_.1} parent=27 // pred_check_branch
        %194 = sbr.rel (%p192) target = $region32
      $region31: #{_lambda_.1} parent=27 // pred_region
        %s195 = smul.u32 32, %s17
        %p196 = scmp.lt.s32.totalorder %s195, 63
        %s197 = scalar_select %p196, %s195, 63
        %s198 = smul.addr %s197, 4
        %s199 = scalar_lea.vmem %s0, %s198
        %s200 = smul.u32 32, %s17
      $region32: #{_lambda_.1} parent=27 // pred_fallthru
        _
    $region28: #{_lambda_.1} parent=5 // pred_fallthru
      _
    %p201 = scmp.le.s32.totalorder 1, %s10
    %p202 = scmp.lt.s32.totalorder %s10, 3
    %p203 = pnand %p201, %p202
    %p204 = pneg %p203
    // Predicated region
    $region33: #{_lambda_.1} parent=5 // pred_check
      _
    $region34: #{_lambda_.1} parent=5 // pred_check_branch
      %206 = sbr.rel (%p203) target = $region36
    $region35: #{_lambda_.1} parent=5 // pred_region
      %s207 = ssub.s32 %s10, 1
      %s208 = smul.u32 32, %s19
      %p209 = scmp.lt.s32.totalorder %s208, 63
      %s210 = scalar_select %p209, %s208, 63
      %s211 = smul.addr %s210, 4
      %s212 = scalar_lea.vmem %s0, %s211
      %p213 = pneg %p48
      %p214 = pneg %p45
      %p215 = scmp.lt.s32.totalorder %s20, 0
      %s216 = scalar_select %p215, %s20, 0
      %s217 = smul.addr %s216, 4
      %s218 = scalar_lea.vmem %s1, %s217
      %p219 = pneg %p74
      %p220 = pneg %p71
      %p221 = scmp.lt.s32.totalorder %s20, 0
      %s222 = scalar_select %p221, %s20, 0
      %s223 = scalar_lea.vmem %s2, %s222
      %p224 = pneg %p100
      %p225 = pneg %p97
      %p226 = scmp.lt.s32.totalorder %s20, 0
      %s227 = scalar_select %p226, %s20, 0
      %s228 = scalar_lea.vmem %s3, %s227
      %p229 = pneg %p126
      %p230 = pneg %p123
      %p231 = pneg %p154
      %p232 = pneg %p151
      %s233 = smul.u32 32, %s19
      %p234 = scmp.lt.s32.totalorder %s233, 63
      %s235 = scalar_select %p234, %s233, 63
      %p236 = scmp.lt.s32.totalorder %s20, 0
      %s237 = scalar_select %p236, %s20, 0
      %s238 = sadd.s32 %s237, %s235
      %s239 = smul.addr %s238, 4
      %s240 = scalar_lea.vmem %s4, %s239
      %s241 = smul.u32 32, %s19
      %p242 = scmp.lt.s32.totalorder %s241, 63
      %s243 = scalar_select %p242, %s241, 63
      %s244 = smul.addr %s243, 4
      %s245 = scalar_lea.vmem %s0, %s244
      %s246 = smul.u32 32, %s19
      %p247 = scmp.lt.s32.totalorder %s20, 0
      %s248 = scalar_select %p247, %s20, 0
      %s249 = smul.addr %s248, 4
      %s250 = scalar_lea.vmem %s1, %s249
      %p251 = scmp.lt.s32.totalorder %s20, 0
      %s252 = scalar_select %p251, %s20, 0
      %s253 = scalar_lea.vmem %s2, %s252
      %p254 = scmp.lt.s32.totalorder %s20, 0
      %s255 = scalar_select %p254, %s20, 0
      %s256 = scalar_lea.vmem %s3, %s255
      %s257 = smul.u32 32, %s19
      %p258 = scmp.lt.s32.totalorder %s257, 63
      %s259 = scalar_select %p258, %s257, 63
      %p260 = scmp.lt.s32.totalorder %s20, 0
      %s261 = scalar_select %p260, %s20, 0
      %s262 = sadd.s32 %s261, %s259
      %s263 = smul.addr %s262, 4
      %s264 = scalar_lea.vmem %s4, %s263
      %s265 = smul.u32 32, %s19
      %v267 = vld [vmem:[%s245] sm:$0xf]
      %v268 = vld [vmem:[%s245 + $0x4] sm:$0xf]
      %v269 = vld [vmem:[%s245 + $0x8] sm:$0xf]
      %v270 = vld [vmem:[%s245 + $0xc] sm:$0xf]
      %v271 = vld [vmem:[%s245 + $0x10] sm:$0xf]
      %v272 = vld [vmem:[%s245 + $0x14] sm:$0xf]
      %v273 = vld [vmem:[%s245 + $0x18] sm:$0xf]
      %v274 = vld [vmem:[%s245 + $0x1c] sm:$0xf]
      %v275 = vld [vmem:[%s245 + $0x20] sm:$0xf]
      %v276 = vld [vmem:[%s245 + $0x24] sm:$0xf]
      %v277 = vld [vmem:[%s245 + $0x28] sm:$0xf]
      %v278 = vld [vmem:[%s245 + $0x2c] sm:$0xf]
      %v279 = vld [vmem:[%s245 + $0x30] sm:$0xf]
      %v280 = vld [vmem:[%s245 + $0x34] sm:$0xf]
      %v281 = vld [vmem:[%s245 + $0x38] sm:$0xf]
      %v282 = vld [vmem:[%s245 + $0x3c] sm:$0xf]
      %v283 = vld [vmem:[%s245 + $0x40] sm:$0xf]
      %v284 = vld [vmem:[%s245 + $0x44] sm:$0xf]
      %v285 = vld [vmem:[%s245 + $0x48] sm:$0xf]
      %v286 = vld [vmem:[%s245 + $0x4c] sm:$0xf]
      %v287 = vld [vmem:[%s245 + $0x50] sm:$0xf]
      %v288 = vld [vmem:[%s245 + $0x54] sm:$0xf]
      %v289 = vld [vmem:[%s245 + $0x58] sm:$0xf]
      %v290 = vld [vmem:[%s245 + $0x5c] sm:$0xf]
      %v291 = vld [vmem:[%s245 + $0x60] sm:$0xf]
      %v292 = vld [vmem:[%s245 + $0x64] sm:$0xf]
      %v293 = vld [vmem:[%s245 + $0x68] sm:$0xf]
      %v294 = vld [vmem:[%s245 + $0x6c] sm:$0xf]
      %v295 = vld [vmem:[%s245 + $0x70] sm:$0xf]
      %v296 = vld [vmem:[%s245 + $0x74] sm:$0xf]
      %v297 = vld [vmem:[%s245 + $0x78] sm:$0xf]
      %v298 = vld [vmem:[%s245 + $0x7c] sm:$0xf]
      %v299 = vld [vmem:[%s250] sm:$0xf]
      %v300 = vld [vmem:[%s250 + $0x4] sm:$0xf]
      %v301 = vld [vmem:[%s250 + $0x8] sm:$0xf]
      %v302 = vld [vmem:[%s250 + $0xc] sm:$0xf]
      %v303 = vld [vmem:[%s250 + $0x10] sm:$0x3]
      %v336 = vunpack.c.l.b16 %v267
      %v337 = vunpack.c.l.b16 %v268
      %v338 = vunpack.c.l.b16 %v269
      %v339 = vunpack.c.l.b16 %v270
      %v340 = vunpack.c.l.b16 %v271
      %v341 = vunpack.c.l.b16 %v272
      %v342 = vunpack.c.l.b16 %v273
      %v343 = vunpack.c.l.b16 %v274
      %v344 = vunpack.c.l.b16 %v275
      %v345 = vunpack.c.l.b16 %v276
      %v346 = vunpack.c.l.b16 %v277
      %v347 = vunpack.c.l.b16 %v278
      %v348 = vunpack.c.l.b16 %v279
      %v349 = vunpack.c.l.b16 %v280
      %v350 = vunpack.c.l.b16 %v281
      %v351 = vunpack.c.l.b16 %v282
      %v352 = vunpack.c.l.b16 %v283
      %v353 = vunpack.c.l.b16 %v284
      %v354 = vunpack.c.l.b16 %v285
      %v355 = vunpack.c.l.b16 %v286
      %v356 = vunpack.c.l.b16 %v287
      %v357 = vunpack.c.l.b16 %v288
      %v358 = vunpack.c.l.b16 %v289
      %v359 = vunpack.c.l.b16 %v290
      %v360 = vunpack.c.l.b16 %v291
      %v361 = vunpack.c.l.b16 %v292
      %v362 = vunpack.c.l.b16 %v293
      %v363 = vunpack.c.l.b16 %v294
      %v364 = vunpack.c.l.b16 %v295
      %v365 = vunpack.c.l.b16 %v296
      %v366 = vunpack.c.l.b16 %v297
      %v367 = vunpack.c.l.b16 %v298
      %v368 = vpack.c.b16 %v337, %v336
      %v369 = vpack.c.b16 %v339, %v338
      %v370 = vpack.c.b16 %v341, %v340
      %v371 = vpack.c.b16 %v343, %v342
      %v372 = vpack.c.b16 %v345, %v344
      %v373 = vpack.c.b16 %v347, %v346
      %v374 = vpack.c.b16 %v349, %v348
      %v375 = vpack.c.b16 %v351, %v350
      %v376 = vpack.c.b16 %v353, %v352
      %v377 = vpack.c.b16 %v355, %v354
      %v378 = vpack.c.b16 %v357, %v356
      %v379 = vpack.c.b16 %v359, %v358
      %v380 = vpack.c.b16 %v361, %v360
      %v381 = vpack.c.b16 %v363, %v362
      %v382 = vpack.c.b16 %v365, %v364
      %v383 = vpack.c.b16 %v367, %v366
      %v389 = vunpack.c.l.b16 %v299
      %v390 = vunpack.c.l.b16 %v300
      %v391 = vunpack.c.l.b16 %v301
      %v392 = vunpack.c.l.b16 %v302
      %v393 = vunpack.c.l.b16 %v303
      %v394 = vpack.c.b16 %v390, %v389
      %v395 = vpack.c.b16 %v392, %v391
      %v396 = vpack.c.b16 %v393, %v393
      %vm399 = vcmask 293888
      %v401 = vsel %vm399, %v368, 0
      %v404 = vsel %vm399, %v369, 0
      %v407 = vsel %vm399, %v370, 0
      %v410 = vsel %vm399, %v371, 0
      %v413 = vsel %vm399, %v372, 0
      %v416 = vsel %vm399, %v373, 0
      %v419 = vsel %vm399, %v374, 0
      %v422 = vsel %vm399, %v375, 0
      %v425 = vsel %vm399, %v376, 0
      %v428 = vsel %vm399, %v377, 0
      %v431 = vsel %vm399, %v378, 0
      %v434 = vsel %vm399, %v379, 0
      %v437 = vsel %vm399, %v380, 0
      %v440 = vsel %vm399, %v381, 0
      %v443 = vsel %vm399, %v382, 0
      %v446 = vsel %vm399, %v383, 0
      %vm448 = vcmask 1041408
      %v450 = vsel %vm448, %v396, 0
      %452 = vmatprep.subr.bf16.mxu0 0
      %453 = vmatpush1.bf16.msra.mxu0 %v394
      %454 = vmatprep.subr.bf16.mxu0 0
      %455 = vmatpush1.bf16.msra.mxu0 %v395
      %456 = vmatprep.subr.bf16.mxu0 0
      %457 = vmatpush1.bf16.msra.mxu0 %v450
      %458 = vmatprep.subr.bf16.mxu0 0
      %459 = vmatpush1.bf16.msra.mxu0 0
      %460 = vmatprep.subr.bf16.mxu0 0
      %461 = vmatpush1.bf16.msra.mxu0 0
      %462 = vmatprep.subr.bf16.mxu0 0
      %463 = vmatpush1.bf16.msra.mxu0 0
      %464 = vmatprep.subr.bf16.mxu0 0
      %465 = vmatpush1.bf16.msra.mxu0 0
      %466 = vmatprep.subr.bf16.mxu0 0
      %467 = vmatpush1.bf16.msra.mxu0 0
      %468 = vmatprep.subr.bf16.mxu0 0
      %469 = vmatpush1.bf16.msra.mxu0 0
      %470 = vmatprep.subr.bf16.mxu0 0
      %471 = vmatpush1.bf16.msra.mxu0 0
      %472 = vmatprep.subr.bf16.mxu0 0
      %473 = vmatpush1.bf16.msra.mxu0 0
      %474 = vmatprep.subr.bf16.mxu0 0
      %475 = vmatpush1.bf16.msra.mxu0 0
      %476 = vmatprep.subr.bf16.mxu0 0
      %477 = vmatpush1.bf16.msra.mxu0 0
      %478 = vmatprep.subr.bf16.mxu0 0
      %479 = vmatpush1.bf16.msra.mxu0 0
      %480 = vmatprep.subr.bf16.mxu0 0
      %481 = vmatpush1.bf16.msra.mxu0 0
      %482 = vmatprep.subr.bf16.mxu0 0
      %483 = vmatpush1.bf16.msra.mxu0 0
      %484 = vmatprep.mubr.bf16.mxu0 0
      %485 = vmatmul.mubr.bf16.gmra.mrb[0].mxu0 %v401
      %v486 = vpop.f32.mrb[0].mxu0
      %v487 = vadd.f32 0.0, %v486
      %v488 = vpop.f32.mrb[0].mxu0
      %v489 = vpop.f32.mrb[0].mxu0
      %v490 = vadd.f32 0.0, %v489
      %v491 = vpop.f32.mrb[0].mxu0
      %492 = vmatprep.mubr.bf16.mxu0 0
      %493 = vmatmul.mubr.bf16.gmra.mrb[0].mxu0 %v404
      %v494 = vpop.f32.mrb[0].mxu0
      %v495 = vadd.f32 0.0, %v494
      %v496 = vpop.f32.mrb[0].mxu0
      %v497 = vpop.f32.mrb[0].mxu0
      %v498 = vadd.f32 0.0, %v497
      %v499 = vpop.f32.mrb[0].mxu0
      %500 = vmatprep.mubr.bf16.mxu0 0
      %501 = vmatmul.mubr.bf16.gmra.mrb[0].mxu0 %v407
      %v502 = vpop.f32.mrb[0].mxu0
      %v503 = vadd.f32 0.0, %v502
      %v504 = vpop.f32.mrb[0].mxu0
      %v505 = vpop.f32.mrb[0].mxu0
      %v506 = vadd.f32 0.0, %v505
      %v507 = vpop.f32.mrb[0].mxu0
      %508 = vmatprep.mubr.bf16.mxu0 0
      %509 = vmatmul.mubr.bf16.gmra.mrb[0].mxu0 %v410
      %v510 = vpop.f32.mrb[0].mxu0
      %v511 = vadd.f32 0.0, %v510
      %v512 = vpop.f32.mrb[0].mxu0
      %v513 = vpop.f32.mrb[0].mxu0
      %v514 = vadd.f32 0.0, %v513
      %v515 = vpop.f32.mrb[0].mxu0
      %516 = vmatprep.mubr.bf16.mxu0 0
      %517 = vmatmul.mubr.bf16.gmra.mrb[0].mxu0 %v413
      %v518 = vpop.f32.mrb[0].mxu0
      %v519 = vadd.f32 0.0, %v518
      %v520 = vpop.f32.mrb[0].mxu0
      %v521 = vpop.f32.mrb[0].mxu0
      %v522 = vadd.f32 0.0, %v521
      %v523 = vpop.f32.mrb[0].mxu0
      %524 = vmatprep.mubr.bf16.mxu0 0
      %525 = vmatmul.mubr.bf16.gmra.mrb[0].mxu0 %v416
      %v526 = vpop.f32.mrb[0].mxu0
      %v527 = vadd.f32 0.0, %v526
      %v528 = vpop.f32.mrb[0].mxu0
      %v529 = vpop.f32.mrb[0].mxu0
      %v530 = vadd.f32 0.0, %v529
      %v531 = vpop.f32.mrb[0].mxu0
      %532 = vmatprep.mubr.bf16.mxu0 0
      %533 = vmatmul.mubr.bf16.gmra.mrb[0].mxu0 %v419
      %v534 = vpop.f32.mrb[0].mxu0
      %v535 = vadd.f32 0.0, %v534
      %v536 = vpop.f32.mrb[0].mxu0
      %v537 = vpop.f32.mrb[0].mxu0
      %v538 = vadd.f32 0.0, %v537
      %v539 = vpop.f32.mrb[0].mxu0
      %540 = vmatprep.mubr.bf16.mxu0 0
      %541 = vmatmul.mubr.bf16.gmra.mrb[0].mxu0 %v422
      %v542 = vpop.f32.mrb[0].mxu0
      %v543 = vadd.f32 0.0, %v542
      %v544 = vpop.f32.mrb[0].mxu0
      %v545 = vpop.f32.mrb[0].mxu0
      %v546 = vadd.f32 0.0, %v545
      %v547 = vpop.f32.mrb[0].mxu0
      %548 = vmatprep.mubr.bf16.mxu0 0
      %549 = vmatmul.mubr.bf16.gmra.mrb[0].mxu0 %v425
      %v550 = vpop.f32.mrb[0].mxu0
      %v551 = vadd.f32 0.0, %v550
      %v552 = vpop.f32.mrb[0].mxu0
      %v553 = vpop.f32.mrb[0].mxu0
      %v554 = vadd.f32 0.0, %v553
      %v555 = vpop.f32.mrb[0].mxu0
      %556 = vmatprep.mubr.bf16.mxu0 0
      %557 = vmatmul.mubr.bf16.gmra.mrb[0].mxu0 %v428
      %v558 = vpop.f32.mrb[0].mxu0
      %v559 = vadd.f32 0.0, %v558
      %v560 = vpop.f32.mrb[0].mxu0
      %v561 = vpop.f32.mrb[0].mxu0
      %v562 = vadd.f32 0.0, %v561
      %v563 = vpop.f32.mrb[0].mxu0
      %564 = vmatprep.mubr.bf16.mxu0 0
      %565 = vmatmul.mubr.bf16.gmra.mrb[0].mxu0 %v431
      %v566 = vpop.f32.mrb[0].mxu0
      %v567 = vadd.f32 0.0, %v566
      %v568 = vpop.f32.mrb[0].mxu0
      %v569 = vpop.f32.mrb[0].mxu0
      %v570 = vadd.f32 0.0, %v569
      %v571 = vpop.f32.mrb[0].mxu0
      %572 = vmatprep.mubr.bf16.mxu0 0
      %573 = vmatmul.mubr.bf16.gmra.mrb[0].mxu0 %v434
      %v574 = vpop.f32.mrb[0].mxu0
      %v575 = vadd.f32 0.0, %v574
      %v576 = vpop.f32.mrb[0].mxu0
      %v577 = vpop.f32.mrb[0].mxu0
      %v578 = vadd.f32 0.0, %v577
      %v579 = vpop.f32.mrb[0].mxu0
      %580 = vmatprep.mubr.bf16.mxu0 0
      %581 = vmatmul.mubr.bf16.gmra.mrb[0].mxu0 %v437
      %v582 = vpop.f32.mrb[0].mxu0
      %v583 = vadd.f32 0.0, %v582
      %v584 = vpop.f32.mrb[0].mxu0
      %v585 = vpop.f32.mrb[0].mxu0
      %v586 = vadd.f32 0.0, %v585
      %v587 = vpop.f32.mrb[0].mxu0
      %588 = vmatprep.mubr.bf16.mxu0 0
      %589 = vmatmul.mubr.bf16.gmra.mrb[0].mxu0 %v440
      %v590 = vpop.f32.mrb[0].mxu0
      %v591 = vadd.f32 0.0, %v590
      %v592 = vpop.f32.mrb[0].mxu0
      %v593 = vpop.f32.mrb[0].mxu0
      %v594 = vadd.f32 0.0, %v593
      %v595 = vpop.f32.mrb[0].mxu0
      %596 = vmatprep.mubr.bf16.mxu0 0
      %597 = vmatmul.mubr.bf16.gmra.mrb[0].mxu0 %v443
      %v598 = vpop.f32.mrb[0].mxu0
      %v599 = vadd.f32 0.0, %v598
      %v600 = vpop.f32.mrb[0].mxu0
      %v601 = vpop.f32.mrb[0].mxu0
      %v602 = vadd.f32 0.0, %v601
      %v603 = vpop.f32.mrb[0].mxu0
      %604 = vmatprep.mubr.bf16.mxu0 0
      %605 = vmatmul.mubr.bf16.gmra.mrb[0].mxu0 %v446
      %v606 = vpop.f32.mrb[0].mxu0
      %v607 = vadd.f32 0.0, %v606
      %v608 = vpop.f32.mrb[0].mxu0
      %v609 = vpop.f32.mrb[0].mxu0
      %v610 = vadd.f32 0.0, %v609
      %v611 = vpop.f32.mrb[0].mxu0
      %612 = vdwg.mxu0
      %v613 = vld [vmem:[%s253] sm:$0x1]
      %v615 = vlaneseq
      %v616 = vshrl.u32 %v615, 7
      %v617 = vsub.s32 0, %v616
      %v618 = vrot.slane %v613, %v617
      %v620 = vmul.f32 %v487, %v618
      %v621 = vmul.f32 %v490, %v618
      %v622 = vmul.f32 %v495, %v618
      %v623 = vmul.f32 %v498, %v618
      %v624 = vmul.f32 %v503, %v618
      %v625 = vmul.f32 %v506, %v618
      %v626 = vmul.f32 %v511, %v618
      %v627 = vmul.f32 %v514, %v618
      %v628 = vmul.f32 %v519, %v618
      %v629 = vmul.f32 %v522, %v618
      %v630 = vmul.f32 %v527, %v618
      %v631 = vmul.f32 %v530, %v618
      %v632 = vmul.f32 %v535, %v618
      %v633 = vmul.f32 %v538, %v618
      %v634 = vmul.f32 %v543, %v618
      %v635 = vmul.f32 %v546, %v618
      %v636 = vmul.f32 %v551, %v618
      %v637 = vmul.f32 %v554, %v618
      %v638 = vmul.f32 %v559, %v618
      %v639 = vmul.f32 %v562, %v618
      %v640 = vmul.f32 %v567, %v618
      %v641 = vmul.f32 %v570, %v618
      %v642 = vmul.f32 %v575, %v618
      %v643 = vmul.f32 %v578, %v618
      %v644 = vmul.f32 %v583, %v618
      %v645 = vmul.f32 %v586, %v618
      %v646 = vmul.f32 %v591, %v618
      %v647 = vmul.f32 %v594, %v618
      %v648 = vmul.f32 %v599, %v618
      %v649 = vmul.f32 %v602, %v618
      %v650 = vmul.f32 %v607, %v618
      %v651 = vmul.f32 %v610, %v618
      %v652 = vld [vmem:[%s256] sm:$0x1]
      %v654 = vlaneseq
      %v655 = vshrl.u32 %v654, 7
      %v656 = vsub.s32 0, %v655
      %v657 = vrot.slane %v652, %v656
      %v659 = vadd.f32 %v620, %v657
      %v660 = vadd.f32 %v621, %v657
      %v661 = vadd.f32 %v622, %v657
      %v662 = vadd.f32 %v623, %v657
      %v663 = vadd.f32 %v624, %v657
      %v664 = vadd.f32 %v625, %v657
      %v665 = vadd.f32 %v626, %v657
      %v666 = vadd.f32 %v627, %v657
      %v667 = vadd.f32 %v628, %v657
      %v668 = vadd.f32 %v629, %v657
      %v669 = vadd.f32 %v630, %v657
      %v670 = vadd.f32 %v631, %v657
      %v671 = vadd.f32 %v632, %v657
      %v672 = vadd.f32 %v633, %v657
      %v673 = vadd.f32 %v634, %v657
      %v674 = vadd.f32 %v635, %v657
      %v675 = vadd.f32 %v636, %v657
      %v676 = vadd.f32 %v637, %v657
      %v677 = vadd.f32 %v638, %v657
      %v678 = vadd.f32 %v639, %v657
      %v679 = vadd.f32 %v640, %v657
      %v680 = vadd.f32 %v641, %v657
      %v681 = vadd.f32 %v642, %v657
      %v682 = vadd.f32 %v643, %v657
      %v683 = vadd.f32 %v644, %v657
      %v684 = vadd.f32 %v645, %v657
      %v685 = vadd.f32 %v646, %v657
      %v686 = vadd.f32 %v647, %v657
      %v687 = vadd.f32 %v648, %v657
      %v688 = vadd.f32 %v649, %v657
      %v689 = vadd.f32 %v650, %v657
      %v690 = vadd.f32 %v651, %v657
      %v691 = vmax.f32 %v659, 0.0
      %v692 = vmax.f32 %v660, 0.0
      %v693 = vmax.f32 %v661, 0.0
      %v694 = vmax.f32 %v662, 0.0
      %v695 = vmax.f32 %v663, 0.0
      %v696 = vmax.f32 %v664, 0.0
      %v697 = vmax.f32 %v665, 0.0
      %v698 = vmax.f32 %v666, 0.0
      %v699 = vmax.f32 %v667, 0.0
      %v700 = vmax.f32 %v668, 0.0
      %v701 = vmax.f32 %v669, 0.0
      %v702 = vmax.f32 %v670, 0.0
      %v703 = vmax.f32 %v671, 0.0
      %v704 = vmax.f32 %v672, 0.0
      %v705 = vmax.f32 %v673, 0.0
      %v706 = vmax.f32 %v674, 0.0
      %v707 = vmax.f32 %v675, 0.0
      %v708 = vmax.f32 %v676, 0.0
      %v709 = vmax.f32 %v677, 0.0
      %v710 = vmax.f32 %v678, 0.0
      %v711 = vmax.f32 %v679, 0.0
      %v712 = vmax.f32 %v680, 0.0
      %v713 = vmax.f32 %v681, 0.0
      %v714 = vmax.f32 %v682, 0.0
      %v715 = vmax.f32 %v683, 0.0
      %v716 = vmax.f32 %v684, 0.0
      %v717 = vmax.f32 %v685, 0.0
      %v718 = vmax.f32 %v686, 0.0
      %v719 = vmax.f32 %v687, 0.0
      %v720 = vmax.f32 %v688, 0.0
      %v721 = vmax.f32 %v689, 0.0
      %v722 = vmax.f32 %v690, 0.0
      %v723 = vpack.c.bf16 %v692, %v691
      %v724 = vpack.c.bf16 %v694, %v693
      %v725 = vpack.c.bf16 %v696, %v695
      %v726 = vpack.c.bf16 %v698, %v697
      %v727 = vpack.c.bf16 %v700, %v699
      %v728 = vpack.c.bf16 %v702, %v701
      %v729 = vpack.c.bf16 %v704, %v703
      %v730 = vpack.c.bf16 %v706, %v705
      %v731 = vpack.c.bf16 %v708, %v707
      %v732 = vpack.c.bf16 %v710, %v709
      %v733 = vpack.c.bf16 %v712, %v711
      %v734 = vpack.c.bf16 %v714, %v713
      %v735 = vpack.c.bf16 %v716, %v715
      %v736 = vpack.c.bf16 %v718, %v717
      %v737 = vpack.c.bf16 %v720, %v719
      %v738 = vpack.c.bf16 %v722, %v721
      %v755 = vunpack.c.l.b16 %v723
      %v756 = vunpack.c.h.b16 %v723
      %v757 = vunpack.c.l.b16 %v724
      %v758 = vunpack.c.h.b16 %v724
      %v759 = vunpack.c.l.b16 %v725
      %v760 = vunpack.c.h.b16 %v725
      %v761 = vunpack.c.l.b16 %v726
      %v762 = vunpack.c.h.b16 %v726
      %v763 = vunpack.c.l.b16 %v727
      %v764 = vunpack.c.h.b16 %v727
      %v765 = vunpack.c.l.b16 %v728
      %v766 = vunpack.c.h.b16 %v728
      %v767 = vunpack.c.l.b16 %v729
      %v768 = vunpack.c.h.b16 %v729
      %v769 = vunpack.c.l.b16 %v730
      %v770 = vunpack.c.h.b16 %v730
      %v771 = vunpack.c.l.b16 %v731
      %v772 = vunpack.c.h.b16 %v731
      %v773 = vunpack.c.l.b16 %v732
      %v774 = vunpack.c.h.b16 %v732
      %v775 = vunpack.c.l.b16 %v733
      %v776 = vunpack.c.h.b16 %v733
      %v777 = vunpack.c.l.b16 %v734
      %v778 = vunpack.c.h.b16 %v734
      %v779 = vunpack.c.l.b16 %v735
      %v780 = vunpack.c.h.b16 %v735
      %v781 = vunpack.c.l.b16 %v736
      %v782 = vunpack.c.h.b16 %v736
      %v783 = vunpack.c.l.b16 %v737
      %v784 = vunpack.c.h.b16 %v737
      %v785 = vunpack.c.l.b16 %v738
      %v786 = vunpack.c.h.b16 %v738
      %v787 = vpack.c.b16 %v755, %v755
      %v788 = vpack.c.b16 %v756, %v756
      %v789 = vpack.c.b16 %v757, %v757
      %v790 = vpack.c.b16 %v758, %v758
      %v791 = vpack.c.b16 %v759, %v759
      %v792 = vpack.c.b16 %v760, %v760
      %v793 = vpack.c.b16 %v761, %v761
      %v794 = vpack.c.b16 %v762, %v762
      %v795 = vpack.c.b16 %v763, %v763
      %v796 = vpack.c.b16 %v764, %v764
      %v797 = vpack.c.b16 %v765, %v765
      %v798 = vpack.c.b16 %v766, %v766
      %v799 = vpack.c.b16 %v767, %v767
      %v800 = vpack.c.b16 %v768, %v768
      %v801 = vpack.c.b16 %v769, %v769
      %v802 = vpack.c.b16 %v770, %v770
      %v803 = vpack.c.b16 %v771, %v771
      %v804 = vpack.c.b16 %v772, %v772
      %v805 = vpack.c.b16 %v773, %v773
      %v806 = vpack.c.b16 %v774, %v774
      %v807 = vpack.c.b16 %v775, %v775
      %v808 = vpack.c.b16 %v776, %v776
      %v809 = vpack.c.b16 %v777, %v777
      %v810 = vpack.c.b16 %v778, %v778
      %v811 = vpack.c.b16 %v779, %v779
      %v812 = vpack.c.b16 %v780, %v780
      %v813 = vpack.c.b16 %v781, %v781
      %v814 = vpack.c.b16 %v782, %v782
      %v815 = vpack.c.b16 %v783, %v783
      %v816 = vpack.c.b16 %v784, %v784
      %v817 = vpack.c.b16 %v785, %v785
      %v818 = vpack.c.b16 %v786, %v786
      %851 = vst [vmem:[%s264] sm:$0xf] %v787
      %852 = vst [vmem:[%s264 + $0x4] sm:$0xf] %v788
      %853 = vst [vmem:[%s264 + $0x8] sm:$0xf] %v789
      %854 = vst [vmem:[%s264 + $0xc] sm:$0xf] %v790
      %855 = vst [vmem:[%s264 + $0x10] sm:$0xf] %v791
      %856 = vst [vmem:[%s264 + $0x14] sm:$0xf] %v792
      %857 = vst [vmem:[%s264 + $0x18] sm:$0xf] %v793
      %858 = vst [vmem:[%s264 + $0x1c] sm:$0xf] %v794
      %859 = vst [vmem:[%s264 + $0x20] sm:$0xf] %v795
      %860 = vst [vmem:[%s264 + $0x24] sm:$0xf] %v796
      %861 = vst [vmem:[%s264 + $0x28] sm:$0xf] %v797
      %862 = vst [vmem:[%s264 + $0x2c] sm:$0xf] %v798
      %863 = vst [vmem:[%s264 + $0x30] sm:$0xf] %v799
      %864 = vst [vmem:[%s264 + $0x34] sm:$0xf] %v800
      %865 = vst [vmem:[%s264 + $0x38] sm:$0xf] %v801
      %866 = vst [vmem:[%s264 + $0x3c] sm:$0xf] %v802
      %867 = vst [vmem:[%s264 + $0x40] sm:$0xf] %v803
      %868 = vst [vmem:[%s264 + $0x44] sm:$0xf] %v804
      %869 = vst [vmem:[%s264 + $0x48] sm:$0xf] %v805
      %870 = vst [vmem:[%s264 + $0x4c] sm:$0xf] %v806
      %871 = vst [vmem:[%s264 + $0x50] sm:$0xf] %v807
      %872 = vst [vmem:[%s264 + $0x54] sm:$0xf] %v808
      %873 = vst [vmem:[%s264 + $0x58] sm:$0xf] %v809
      %874 = vst [vmem:[%s264 + $0x5c] sm:$0xf] %v810
      %875 = vst [vmem:[%s264 + $0x60] sm:$0xf] %v811
      %876 = vst [vmem:[%s264 + $0x64] sm:$0xf] %v812
      %877 = vst [vmem:[%s264 + $0x68] sm:$0xf] %v813
      %878 = vst [vmem:[%s264 + $0x6c] sm:$0xf] %v814
      %879 = vst [vmem:[%s264 + $0x70] sm:$0xf] %v815
      %880 = vst [vmem:[%s264 + $0x74] sm:$0xf] %v816
      %881 = vst [vmem:[%s264 + $0x78] sm:$0xf] %v817
      %882 = vst [vmem:[%s264 + $0x7c] sm:$0xf] %v818
      %s883 = smul.u32 32, %s19
      %p884 = scmp.lt.s32.totalorder %s883, 63
      %s885 = scalar_select %p884, %s883, 63
      %p886 = scmp.lt.s32.totalorder %s20, 0
      %s887 = scalar_select %p886, %s20, 0
      %s888 = sadd.s32 %s887, %s885
      %s889 = smul.addr %s888, 4
      %s890 = scalar_lea.vmem %s4, %s889
      // Predicated region
      $region37: #{_lambda_.1} parent=35 // pred_check
        %p891 = pneg %p151
      $region38: #{_lambda_.1} parent=35 // pred_check_branch
        %893 = sbr.rel (%p891) target = $region40
      $region39: #{_lambda_.1} parent=35 // pred_region
        %s894 = smul.u32 32, %s19
      $region40: #{_lambda_.1} parent=35 // pred_fallthru
        _
    $region36: #{_lambda_.1} parent=5 // pred_fallthru
      _
    %p895 = scmp.le.s32.totalorder 2, %s10
    // Predicated region
    $region41: #{_lambda_.1} parent=5 // pred_check
      %p896 = pneg %p895
    $region42: #{_lambda_.1} parent=5 // pred_check_branch
      %898 = sbr.rel (%p896) target = $region44
    $region43: #{_lambda_.1} parent=5 // pred_region
      %s899 = ssub.s32 %s10, 2
      // Predicated region
      $region45: #{_lambda_.1} parent=43 // pred_check
        %p900 = pneg %p157
      $region46: #{_lambda_.1} parent=43 // pred_check_branch
        %902 = sbr.rel (%p900) target = $region48
      $region47: #{_lambda_.1} parent=43 // pred_region
        %s903 = smul.u32 32, %s21
        %p904 = scmp.lt.s32.totalorder %s903, 63
        %s905 = scalar_select %p904, %s903, 63
        %p906 = scmp.lt.s32.totalorder %s22, 0
        %s907 = scalar_select %p906, %s22, 0
        %s908 = sadd.s32 %s907, %s905
        %s909 = smul.addr %s908, 4
        %s910 = scalar_lea.vmem %s4, %s909
      $region48: #{_lambda_.1} parent=43 // pred_fallthru
        _
    $region44: #{_lambda_.1} parent=5 // pred_fallthru
      _
  $region6: #{_lambda_.1} parent=0 // loop_footer
    %s14 = sadd.s32 1, %s10
  $region7: #{_lambda_.1} parent=0 // loop_footer_branch
    %9 = sbr.rel target = $region3
  $region8: #{_lambda_.1} parent=0 // loop_exit
    _

</llo_original>
